<compile_context>
chip_gen: v7x
topology: tpu7x:2x2x1
jax: 0.10.0
libtpu: 0.0.40
codegen_flags: <defaults>
</compile_context>

<pallas_src>
import functools
import math

import jax
import jax.numpy as jnp
from jax.experimental import pallas as pl
from jax.experimental.pallas import tpu as pltpu

LANE = 128   # TPU lane width; hidden dims are padded to it inside the packed buffer.
SUB = 8      # sublane granularity


def _round_up(x, m):
    return (x + m - 1) // m * m


# ---------------------------------------------------------------------------
# Kernels
# ---------------------------------------------------------------------------
def _qnet_kernel(x_ref, p_ref, out_ref, *, s, s_pad, a):
    """Non-dueling tile: out = fc3(relu(fc2(relu(fc1(x))))).

    p_ref (bf16, lane-dense) layout:
      [0          : s_pad      )  W1  (state_size x fc1, top-left)
      [s_pad      : s_pad+128  )  W2  (fc1 x fc2, top-left)
      [s_pad+128  : s_pad+256  )  W3  (fc2 x action_size, top-left)
      [s_pad+256  : s_pad+264  )  biases: row0=b1, row1=b2, row2=b3
    """
    f32 = jnp.float32
    bf16 = jnp.bfloat16
    x = x_ref[...].astype(bf16)                               # (bt, s)
    w1 = p_ref[0:s, :]                                        # (s, 128)
    w2 = p_ref[s_pad:s_pad + LANE, :]
    w3 = p_ref[s_pad + LANE:s_pad + 2 * LANE, :]
    bias = p_ref[s_pad + 2 * LANE:s_pad + 2 * LANE + SUB, :].astype(f32)
    b1, b2, b3 = bias[0:1, :], bias[1:2, :], bias[2:3, :]

    h1 = jnp.maximum(jnp.dot(x, w1, preferred_element_type=f32) + b1, 0.0)
    h2 = jnp.maximum(
        jnp.dot(h1.astype(bf16), w2, preferred_element_type=f32) + b2, 0.0)
    q = jnp.dot(h2.astype(bf16), w3, preferred_element_type=f32) + b3   # (bt,128)
    out_ref[...] = q[:, 0:a]                                  # narrow store


def _qnet_dueling_kernel(x_ref, p_ref, out_ref, *, s, s_pad, a):
    """Dueling tile: emits per-row [val | adv] (width 1 + action_size).

    The GLOBAL adv.mean() and `val + adv - mean` are done by the wrapper so the
    batch can be tiled without changing torch semantics.

    p_ref layout:
      [0          : s_pad      )  W1
      [s_pad      : s_pad+128  )  W2
      [s_pad+128  : s_pad+256  )  W_head = [wv | wa1]  (col 0 = value)
      [s_pad+256  : s_pad+384  )  W_a2 shifted down one row (rows 1:1+a1)
      [s_pad+384  : s_pad+392  )  biases: row0=b1, row1=b2, row2=[bv|ba1], row3=ba2
    """
    f32 = jnp.float32
    bf16 = jnp.bfloat16
    x = x_ref[...].astype(bf16)
    w1 = p_ref[0:s, :]
    w2 = p_ref[s_pad:s_pad + LANE, :]
    wh = p_ref[s_pad + LANE:s_pad + 2 * LANE, :]
    wa2 = p_ref[s_pad + 2 * LANE:s_pad + 3 * LANE, :]
    bias = p_ref[s_pad + 3 * LANE:s_pad + 3 * LANE + SUB, :].astype(f32)
    b1, b2, bh, ba2 = bias[0:1, :], bias[1:2, :], bias[2:3, :], bias[3:4, :]

    h1 = jnp.maximum(jnp.dot(x, w1, preferred_element_type=f32) + b1, 0.0)
    h2 = jnp.maximum(
        jnp.dot(h1.astype(bf16), w2, preferred_element_type=f32) + b2, 0.0)

    # Fused value + advantage-hidden head: one MXU op on the h2 path.
    head = jnp.dot(h2.astype(bf16), wh, preferred_element_type=f32) + bh  # (bt,128)
    val = head[:, 0:1]
    # relu; the value col / padded cols are masked by zero rows in shifted W_a2.
    adv_h = jnp.maximum(head, 0.0).astype(bf16)
    adv = jnp.dot(adv_h, wa2, preferred_element_type=f32) + ba2           # (bt,128)

    out_ref[:, 0:1] = val
    out_ref[:, 1:1 + a] = adv[:, 0:a]


# ---------------------------------------------------------------------------
# Parameter packing (one lane-dense bf16 buffer per network)
# ---------------------------------------------------------------------------
def pack_qnetwork_params(params, dtype=jnp.bfloat16):
    w1, b1, w2, b2, w3, b3 = params
    s, f1 = w1.shape
    f2 = w2.shape[1]
    a = w3.shape[1]
    assert max(f1, f2, a) <= LANE, "hidden/action dims must be <= 128"
    sp = _round_up(s, SUB)
    rows = sp + 2 * LANE + SUB
    p = jnp.zeros((rows, LANE), jnp.float32)
    p = p.at[0:s, 0:f1].set(w1)
    p = p.at[sp:sp + f1, 0:f2].set(w2)
    p = p.at[sp + LANE:sp + LANE + f2, 0:a].set(w3)
    rb = sp + 2 * LANE
    p = p.at[rb, 0:f1].set(jnp.reshape(b1, (f1,)))
    p = p.at[rb + 1, 0:f2].set(jnp.reshape(b2, (f2,)))
    p = p.at[rb + 2, 0:a].set(jnp.reshape(b3, (a,)))
    return p.astype(dtype)


def pack_qnetwork_dueling_params(params, dtype=jnp.bfloat16):
    w1, b1, w2, b2, wv, bv, wa1, ba1, wa2, ba2 = params
    s, f1 = w1.shape
    f2 = w2.shape[1]
    a1 = wa1.shape[1]
    a = wa2.shape[1]
    assert f1 <= LANE and f2 <= LANE and (1 + a1) <= LANE and a <= LANE
    sp = _round_up(s, SUB)
    rows = sp + 3 * LANE + SUB
    p = jnp.zeros((rows, LANE), jnp.float32)
    p = p.at[0:s, 0:f1].set(w1)
    p = p.at[sp:sp + f1, 0:f2].set(w2)
    h0 = sp + LANE                       # fused head [wv | wa1]
    p = p.at[h0:h0 + f2, 0:1].set(wv)
    p = p.at[h0:h0 + f2, 1:1 + a1].set(wa1)
    a0 = sp + 2 * LANE                   # wa2 shifted down one row
    p = p.at[a0 + 1:a0 + 1 + a1, 0:a].set(wa2)
    rb = sp + 3 * LANE
    p = p.at[rb, 0:f1].set(jnp.reshape(b1, (f1,)))
    p = p.at[rb + 1, 0:f2].set(jnp.reshape(b2, (f2,)))
    p = p.at[rb + 2, 0].set(jnp.reshape(bv, (1,))[0])
    p = p.at[rb + 2, 1:1 + a1].set(jnp.reshape(ba1, (a1,)))
    p = p.at[rb + 3, 0:a].set(jnp.reshape(ba2, (a,)))
    return p.astype(dtype)


# ---------------------------------------------------------------------------
# Wrappers
# ---------------------------------------------------------------------------
def _batch_tiling(b, block_batch):
    assert block_batch % SUB == 0
    bt = min(block_batch, _round_up(b, SUB))
    b_pad = _round_up(b, bt)          # pad up so the grid always tiles cleanly
    return bt, b_pad


def _vmem_limit_bytes(bt, in_w, out_w, packed_nbytes):
    # 2x double-buffered in/out blocks + resident params + f32 intermediates,
    # with 2x headroom; clamped to [16 MiB, 48 MiB] (safe on v7x's 64 MiB).
    io = 2 * bt * (in_w + out_w) * 4
    interm = 6 * bt * LANE * 4
    need = 2 * (io + interm + packed_nbytes)
    return int(min(max(need, 16 * 2**20), 48 * 2**20))


def _run_tiled(kernel, x, packed_params, out_w, block_batch):
    b, s = x.shape
    bt, b_pad = _batch_tiling(b, block_batch)
    if b_pad != b:
        x = jnp.pad(x, ((0, b_pad - b), (0, 0)))
    out = pl.pallas_call(
        kernel,
        out_shape=jax.ShapeDtypeStruct((b_pad, out_w), jnp.float32),
        grid=(b_pad // bt,),
        in_specs=[
            pl.BlockSpec((bt, s), lambda i: (i, 0)),
            pl.BlockSpec(packed_params.shape, lambda i: (0, 0)),
        ],
        out_specs=pl.BlockSpec((bt, out_w), lambda i: (i, 0)),
        compiler_params=pltpu.CompilerParams(
            dimension_semantics=("parallel",),
            vmem_limit_bytes=_vmem_limit_bytes(
                bt, s, out_w,
                packed_params.size * packed_params.dtype.itemsize),
        ),
    )(x, packed_params)
    return out[:b]


def qnetwork_forward(x, packed_params, action_size, block_batch=2048):
    """Non-dueling forward: (B, state_size) f32 -> (B, action_size) f32."""
    _, s = x.shape
    sp = _round_up(s, SUB)
    kernel = functools.partial(_qnet_kernel, s=s, s_pad=sp, a=action_size)
    return _run_tiled(kernel, x.astype(jnp.float32), packed_params,
                      action_size, block_batch)


def qnetwork_dueling_forward(x, packed_params, action_size, block_batch=2048):
    """Dueling forward: (B, state_size) f32 -> (B, action_size) f32.

    Kernel emits per-row [val | adv]; the GLOBAL adv.mean() (over batch and
    actions, matching torch) and the combine run in plain JAX on the real
    (B, action_size) slice so tiling / padding never changes semantics.
    """
    _, s = x.shape
    sp = _round_up(s, SUB)
    kernel = functools.partial(_qnet_dueling_kernel, s=s, s_pad=sp, a=action_size)
    va = _run_tiled(kernel, x.astype(jnp.float32), packed_params,
                    1 + action_size, block_batch)
    val = va[:, 0:1]
    adv = va[:, 1:]
    return val + (adv - jnp.mean(adv))


# ---------------------------------------------------------------------------
# Deterministic parameter init (PyTorch nn.Linear-style uniform bounds)
# ---------------------------------------------------------------------------
def _linear_init(key, fan_in, fan_out):
    bound = 1.0 / math.sqrt(fan_in)
    kw, kb = jax.random.split(key)
    w = jax.random.uniform(kw, (fan_in, fan_out), jnp.float32, -bound, bound)
    b = jax.random.uniform(kb, (fan_out,), jnp.float32, -bound, bound)
    return w, b


def init_qnetwork_params(key, state_size, action_size, fc1_units=64, fc2_units=64):
    k1, k2, k3 = jax.random.split(key, 3)
    w1, b1 = _linear_init(k1, state_size, fc1_units)
    w2, b2 = _linear_init(k2, fc1_units, fc2_units)
    w3, b3 = _linear_init(k3, fc2_units, action_size)
    return (w1, b1, w2, b2, w3, b3)


def init_qnetwork_dueling_params(key, state_size, action_size,
                                 fc1_units=64, fc2_units=64, a1_size=32):
    k1, k2, k3, k4, k5 = jax.random.split(key, 5)
    w1, b1 = _linear_init(k1, state_size, fc1_units)
    w2, b2 = _linear_init(k2, fc1_units, fc2_units)
    wv, bv = _linear_init(k3, fc2_units, 1)
    wa1, ba1 = _linear_init(k4, fc2_units, a1_size)
    wa2, ba2 = _linear_init(k5, a1_size, action_size)
    return (w1, b1, w2, b2, wv, bv, wa1, ba1, wa2, ba2)


# ---------------------------------------------------------------------------
# Pure-JAX references (f32 torch semantics + bf16-matched numerics)
# ---------------------------------------------------------------------------
def _ref_forward(x, params):
    w1, b1, w2, b2, w3, b3 = params
    h = jax.nn.relu(x @ w1 + b1)
    h = jax.nn.relu(h @ w2 + b2)
    return h @ w3 + b3


def _ref_dueling_forward(x, params):
    w1, b1, w2, b2, wv, bv, wa1, ba1, wa2, ba2 = params
    h = jax.nn.relu(x @ w1 + b1)
    h = jax.nn.relu(h @ w2 + b2)
    val = h @ wv + bv
    adv = jax.nn.relu(h @ wa1 + ba1)
    adv = adv @ wa2 + ba2
    return val + (adv - jnp.mean(adv))


def _bdot(a, b):
    return jnp.dot(a.astype(jnp.bfloat16), b.astype(jnp.bfloat16),
                   preferred_element_type=jnp.float32)


def _b32(v):
    return v.astype(jnp.bfloat16).astype(jnp.float32)


def _ref_forward_bf16(x, params):
    w1, b1, w2, b2, w3, b3 = params
    h = jax.nn.relu(_bdot(x, w1) + _b32(b1))
    h = jax.nn.relu(_bdot(h, w2) + _b32(b2))
    return _bdot(h, w3) + _b32(b3)


def _ref_dueling_forward_bf16(x, params):
    w1, b1, w2, b2, wv, bv, wa1, ba1, wa2, ba2 = params
    h = jax.nn.relu(_bdot(x, w1) + _b32(b1))
    h = jax.nn.relu(_bdot(h, w2) + _b32(b2))
    val = _bdot(h, wv) + _b32(bv)
    adv = jax.nn.relu(_bdot(h, wa1) + _b32(ba1))
    adv = _bdot(adv, wa2) + _b32(ba2)
    return val + (adv - jnp.mean(adv))


# ---------------------------------------------------------------------------
if __name__ == "__main__":
    key = jax.random.PRNGKey(0)
    k_x, k_p1, k_p2, k_xl = jax.random.split(key, 4)

    batch = 2
    state_size = 8
    action_size = 4

    x = jax.random.normal(k_x, (batch, state_size), dtype=jnp.float32)

    # --- Non-dueling QNetwork (tiny batch, single padded tile) ---
    params = init_qnetwork_params(k_p1, state_size, action_size)
    packed = pack_qnetwork_params(params)
    q = qnetwork_forward(x, packed, action_size)
    jax.block_until_ready(q)
    assert q.shape == (batch, action_size)
    assert jnp.allclose(q, _ref_forward_bf16(x, params), atol=1e-3, rtol=1e-3)
    assert jnp.allclose(q, _ref_forward(x, params), atol=5e-2, rtol=5e-2)

    # --- Non-dueling, batch-tiled grid with non-divisible batch (padding path) ---
    xl = jax.random.normal(k_xl, (1000, state_size), dtype=jnp.float32)
    ql = qnetwork_forward(xl, packed, action_size, block_batch=256)
    jax.block_until_ready(ql)
    assert ql.shape == (1000, action_size)
    assert jnp.allclose(ql, _ref_forward_bf16(xl, params), atol=1e-3, rtol=1e-3)

    # --- Dueling QNetwork (tiny batch) ---
    d_params = init_qnetwork_dueling_params(k_p2, state_size, action_size)
    d_packed = pack_qnetwork_dueling_params(d_params)
    qd = qnetwork_dueling_forward(x, d_packed, action_size)
    jax.block_until_ready(qd)
    assert qd.shape == (batch, action_size)
    assert jnp.allclose(qd, _ref_dueling_forward_bf16(x, d_params), atol=1e-3, rtol=1e-3)
    assert jnp.allclose(qd, _ref_dueling_forward(x, d_params), atol=5e-2, rtol=5e-2)

    # --- Dueling, batch-tiled grid (global mean computed in the wrapper) ---
    qdl = qnetwork_dueling_forward(xl, d_packed, action_size, block_batch=256)
    jax.block_until_ready(qdl)
    assert qdl.shape == (1000, action_size)
    assert jnp.allclose(qdl, _ref_dueling_forward_bf16(xl, d_params), atol=1e-3, rtol=1e-3)

    print("KERNEL_OK")
</pallas_src>

<mosaic_0001>
module attributes {stable_mosaic.version = 11 : i64} {
  func.func @_qnet_kernel(%arg0: i32, %arg1: memref<8x8xf32, #tpu.memory_space<vmem>>, %arg2: memref<272x128xbf16, #tpu.memory_space<vmem>>, %arg3: memref<8x4xf32, #tpu.memory_space<vmem>>) attributes {dimension_semantics = [#tpu.dimension_semantics<parallel>], iteration_bounds = array<i64: 1>, scalar_prefetch = 0 : i64, scratch_operands = 0 : i64, tpu.core_type = #tpu.core_type<tc>, window_params = [{transform_indices = @transform_0, window_bounds = array<i64: 8, 8>}, {pipeline_mode = #tpu.pipeline_mode<synchronous>, transform_indices = @transform_1, window_bounds = array<i64: 272, 128>}, {transform_indices = @transform_2, window_bounds = array<i64: 8, 4>}]} {
    %c0 = arith.constant 0 : index
    %c0_0 = arith.constant 0 : index
    %0 = vector.load %arg1[%c0, %c0_0] : memref<8x8xf32, #tpu.memory_space<vmem>>, vector<8x8xf32>
    %1 = arith.truncf %0 : vector<8x8xf32> to vector<8x8xbf16>
    %c0_1 = arith.constant 0 : index
    %c0_2 = arith.constant 0 : index
    %2 = vector.load %arg2[%c0_1, %c0_2] : memref<272x128xbf16, #tpu.memory_space<vmem>>, vector<8x128xbf16>
    %c8 = arith.constant 8 : index
    %c0_3 = arith.constant 0 : index
    %3 = vector.load %arg2[%c8, %c0_3] : memref<272x128xbf16, #tpu.memory_space<vmem>>, vector<128x128xbf16>
    %c136 = arith.constant 136 : index
    %c0_4 = arith.constant 0 : index
    %4 = vector.load %arg2[%c136, %c0_4] : memref<272x128xbf16, #tpu.memory_space<vmem>>, vector<128x128xbf16>
    %c264 = arith.constant 264 : index
    %c0_5 = arith.constant 0 : index
    %5 = vector.load %arg2[%c264, %c0_5] : memref<272x128xbf16, #tpu.memory_space<vmem>>, vector<8x128xbf16>
    %6 = arith.extf %5 : vector<8x128xbf16> to vector<8x128xf32>
    %7 = vector.extract_strided_slice %6 {offsets = [0, 0], sizes = [1, 128], strides = [1, 1]} : vector<8x128xf32> to vector<1x128xf32>
    %8 = vector.extract_strided_slice %6 {offsets = [1, 0], sizes = [1, 128], strides = [1, 1]} : vector<8x128xf32> to vector<1x128xf32>
    %9 = vector.extract_strided_slice %6 {offsets = [2, 0], sizes = [1, 128], strides = [1, 1]} : vector<8x128xf32> to vector<1x128xf32>
    %cst = arith.constant dense<0.000000e+00> : vector<8x128xf32>
    %10 = tpu.matmul %1, %2, %cst {dimension_numbers = #tpu.dot_dimension_numbers<[1], [0], [0], [1], [0, 0, 1, 1], [], []>} : vector<8x8xbf16>, vector<8x128xbf16>, vector<8x128xf32> -> vector<8x128xf32>
    %11 = vector.broadcast %7 : vector<1x128xf32> to vector<8x128xf32>
    %12 = arith.addf %10, %11 : vector<8x128xf32>
    %cst_6 = arith.constant 0.000000e+00 : f32
    %13 = vector.broadcast %cst_6 : f32 to vector<8x128xf32>
    %14 = arith.maximumf %12, %13 : vector<8x128xf32>
    %15 = arith.truncf %14 : vector<8x128xf32> to vector<8x128xbf16>
    %cst_7 = arith.constant dense<0.000000e+00> : vector<8x128xf32>
    %16 = tpu.matmul %15, %3, %cst_7 {dimension_numbers = #tpu.dot_dimension_numbers<[1], [0], [0], [1], [0, 0, 1, 1], [], []>} : vector<8x128xbf16>, vector<128x128xbf16>, vector<8x128xf32> -> vector<8x128xf32>
    %17 = vector.broadcast %8 : vector<1x128xf32> to vector<8x128xf32>
    %18 = arith.addf %16, %17 : vector<8x128xf32>
    %cst_8 = arith.constant 0.000000e+00 : f32
    %19 = vector.broadcast %cst_8 : f32 to vector<8x128xf32>
    %20 = arith.maximumf %18, %19 : vector<8x128xf32>
    %21 = arith.truncf %20 : vector<8x128xf32> to vector<8x128xbf16>
    %cst_9 = arith.constant dense<0.000000e+00> : vector<8x128xf32>
    %22 = tpu.matmul %21, %4, %cst_9 {dimension_numbers = #tpu.dot_dimension_numbers<[1], [0], [0], [1], [0, 0, 1, 1], [], []>} : vector<8x128xbf16>, vector<128x128xbf16>, vector<8x128xf32> -> vector<8x128xf32>
    %23 = vector.broadcast %9 : vector<1x128xf32> to vector<8x128xf32>
    %24 = arith.addf %22, %23 : vector<8x128xf32>
    %25 = vector.extract_strided_slice %24 {offsets = [0, 0], sizes = [8, 4], strides = [1, 1]} : vector<8x128xf32> to vector<8x4xf32>
    %c0_10 = arith.constant 0 : index
    %c0_11 = arith.constant 0 : index
    %26 = vector.load %arg3[%c0_10, %c0_11] : memref<8x4xf32, #tpu.memory_space<vmem>>, vector<8x4xf32>
    tpu.vector_store %arg3[%c0_10, %c0_11], %25 {strides = array<i32>} : memref<8x4xf32, #tpu.memory_space<vmem>>, vector<8x4xf32>,
    return
  }
  func.func @transform_0(%arg0: i32) -> (i32, i32) {
    %c0_i32 = arith.constant 0 : i32
    %c0_i32_0 = arith.constant 0 : i32
    return %arg0, %c0_i32 : i32, i32
  }
  func.func @transform_1(%arg0: i32) -> (i32, i32) {
    %c0_i32 = arith.constant 0 : i32
    %c0_i32_0 = arith.constant 0 : i32
    %c0_i32_1 = arith.constant 0 : i32
    return %c0_i32, %c0_i32_0 : i32, i32
  }
  func.func @transform_2(%arg0: i32) -> (i32, i32) {
    %c0_i32 = arith.constant 0 : i32
    %c0_i32_0 = arith.constant 0 : i32
    return %arg0, %c0_i32 : i32, i32
  }
}

</mosaic_0001>

<llo_original>
// kernel: tpu_custom_call.1
$region0: #{tpu_custom_call.1}
  #allocation0 [shape = 'u32[]', space=smem, size = 0x4, offset = 0x4, fixed_abs, tag = 'smem constant byte address 0x4 - core index']
  #allocation1 [shape = 'u32[144,128]{1,0:T(1,128)}', space=vmem, size = 0x12000, scoped, tag = 'internal scratch']
  %s0 = inlined_call_operand.hbm [shape: f32[8,8], index: 0, kind: input, shape index: {}]
  %s1 = inlined_call_operand.hbm [shape: bf16[272,128], index: 1, kind: input, shape index: {}]
  %s2 = inlined_call_operand.vmem [shape: f32[8,4], index: 2, kind: output, shape index: {}]
  %s3 = sld [smem:[#allocation0]]
  $region26: #{tpu_custom_call.1} parent=0
    _
  %s5 = ssub.s32 1, %s3
  %s6 = scalar_select 0, %s5, %s3
  $region1: #{tpu_custom_call.1} parent=0
    #allocation2 [shape = 'u8[4096]{0}', space=vmem, size = 0x1000, scoped, tag = 'input window, operand 0, single buffered']
    #allocation3 [shape = 's32[1]{0}', space=sflag, size = 0x4, scoped, tag = 'scoped memory for tpu_custom_call.1']
    #allocation4 [shape = 'u8[69632]{0}', space=vmem, size = 0x11000, scoped, tag = 'input window, operand 1, single buffered']
    #allocation5 [shape = 's32[1]{0}', space=sflag, size = 0x4, scoped, tag = 'scoped memory for tpu_custom_call.1']
    %7 = vsyncpa [#allocation3], 0
    %8 = vsyncpa [#allocation5], 0
    // Predicated region
    $region2: #{tpu_custom_call.1} parent=1 // pred_check
      _
    $region3: #{tpu_custom_call.1} parent=1 // pred_check_branch
      %10 = sbr.rel (0) target = $region5
    $region4: #{tpu_custom_call.1} parent=1 // pred_region
      %s12 = ssub.s32 128, 128
      %13 = vsyncadd [#allocation3], %s12
      %s15 = sshll.u32 [#allocation2], 4
      %s16 = int_to_ptr.vmem [resolvable:$true] %s15
      %18 = dma.hbm_to_vmem [thread:$0]  %s0, 128, %s16, [#allocation3]
    $region5: #{tpu_custom_call.1} parent=1 // pred_fallthru
      _
    // Predicated region
    $region6: #{tpu_custom_call.1} parent=1 // pred_check
      _
    $region7: #{tpu_custom_call.1} parent=1 // pred_check_branch
      %20 = sbr.rel (0) target = $region9
    $region8: #{tpu_custom_call.1} parent=1 // pred_region
      %s22 = ssub.s32 2176, 2176
      %23 = vsyncadd [#allocation5], %s22
      %s24 = sshll.u32 [#allocation4], 4
      %s25 = int_to_ptr.vmem [resolvable:$true] %s24
      %30 = dma.hbm_to_vmem [thread:$0]  %s1, 2176, %s25, [#allocation5], 64, 64, 4
    $region9: #{tpu_custom_call.1} parent=1 // pred_fallthru
      _
    // Predicated region
    $region10: #{tpu_custom_call.1} parent=1 // pred_check
      _
    $region11: #{tpu_custom_call.1} parent=1 // pred_check_branch
      %32 = sbr.rel (0) target = $region13
    $region12: #{tpu_custom_call.1} parent=1 // pred_region
      %33 = dma.done [#allocation3], 128
    $region13: #{tpu_custom_call.1} parent=1 // pred_fallthru
      _
    // Predicated region
    $region14: #{tpu_custom_call.1} parent=1 // pred_check
      _
    $region15: #{tpu_custom_call.1} parent=1 // pred_check_branch
      %35 = sbr.rel (0) target = $region17
    $region16: #{tpu_custom_call.1} parent=1 // pred_region
      %36 = dma.done [#allocation5], 2176
    $region17: #{tpu_custom_call.1} parent=1 // pred_fallthru
      _
    %v38 = vld [vmem:[#allocation2] sm:$0xff]
    %v39 = vpack.c.bf16 %v38, %v38
    %v40 = vld [vmem:[#allocation4] sm:$0xf]
    %v41 = vld [vmem:[#allocation4 + $0x4] sm:$0xf]
    %v42 = vld [vmem:[#allocation4 + $0x8] sm:$0xf]
    %v43 = vld [vmem:[#allocation4 + $0xc] sm:$0xf]
    %v44 = vld [vmem:[#allocation4 + $0x10] sm:$0xf]
    %v45 = vld [vmem:[#allocation4 + $0x14] sm:$0xf]
    %v46 = vld [vmem:[#allocation4 + $0x18] sm:$0xf]
    %v47 = vld [vmem:[#allocation4 + $0x1c] sm:$0xf]
    %v48 = vld [vmem:[#allocation4 + $0x20] sm:$0xf]
    %v49 = vld [vmem:[#allocation4 + $0x24] sm:$0xf]
    %v50 = vld [vmem:[#allocation4 + $0x28] sm:$0xf]
    %v51 = vld [vmem:[#allocation4 + $0x2c] sm:$0xf]
    %v52 = vld [vmem:[#allocation4 + $0x30] sm:$0xf]
    %v53 = vld [vmem:[#allocation4 + $0x34] sm:$0xf]
    %v54 = vld [vmem:[#allocation4 + $0x38] sm:$0xf]
    %v55 = vld [vmem:[#allocation4 + $0x3c] sm:$0xf]
    %v56 = vld [vmem:[#allocation4 + $0x40] sm:$0xf]
    %v57 = vld [vmem:[#allocation4 + $0x44] sm:$0xf]
    %v58 = vld [vmem:[#allocation4 + $0x48] sm:$0xf]
    %v59 = vld [vmem:[#allocation4 + $0x4c] sm:$0xf]
    %v60 = vld [vmem:[#allocation4 + $0x50] sm:$0xf]
    %v61 = vld [vmem:[#allocation4 + $0x54] sm:$0xf]
    %v62 = vld [vmem:[#allocation4 + $0x58] sm:$0xf]
    %v63 = vld [vmem:[#allocation4 + $0x5c] sm:$0xf]
    %v64 = vld [vmem:[#allocation4 + $0x60] sm:$0xf]
    %v65 = vld [vmem:[#allocation4 + $0x64] sm:$0xf]
    %v66 = vld [vmem:[#allocation4 + $0x68] sm:$0xf]
    %v67 = vld [vmem:[#allocation4 + $0x6c] sm:$0xf]
    %v68 = vld [vmem:[#allocation4 + $0x70] sm:$0xf]
    %v69 = vld [vmem:[#allocation4 + $0x74] sm:$0xf]
    %v70 = vld [vmem:[#allocation4 + $0x78] sm:$0xf]
    %v71 = vld [vmem:[#allocation4 + $0x7c] sm:$0xf]
    %v72 = vld [vmem:[#allocation4 + $0x80] sm:$0xf]
    %v73 = vld [vmem:[#allocation4 + $0x84] sm:$0xf]
    %v74 = vunpack.c.l.bf16 %v73
    %v75 = vlaneseq
    %v76 = vshrl.u32 %v75, 7
    %v77 = vsub.s32 0, %v76
    %v78 = vrot.slane %v74, %v77
    %vm79 = vcmask 64512
    %v81 = vsel %vm79, %v39, 0
    %vm83 = vcmask 1043456
    %v85 = vsel %vm83, %v40, 0
    %87 = vmatprep.subr.bf16.mxu0 0
    %88 = vmatpush1.bf16.msra.mxu0 %v85
    %89 = vmatprep.subr.bf16.mxu0 0
    %90 = vmatpush1.bf16.msra.mxu0 0
    %91 = vmatprep.subr.bf16.mxu0 0
    %92 = vmatpush1.bf16.msra.mxu0 0
    %93 = vmatprep.subr.bf16.mxu0 0
    %94 = vmatpush1.bf16.msra.mxu0 0
    %95 = vmatprep.subr.bf16.mxu0 0
    %96 = vmatpush1.bf16.msra.mxu0 0
    %97 = vmatprep.subr.bf16.mxu0 0
    %98 = vmatpush1.bf16.msra.mxu0 0
    %99 = vmatprep.subr.bf16.mxu0 0
    %100 = vmatpush1.bf16.msra.mxu0 0
    %101 = vmatprep.subr.bf16.mxu0 0
    %102 = vmatpush1.bf16.msra.mxu0 0
    %103 = vmatprep.subr.bf16.mxu0 0
    %104 = vmatpush1.bf16.msra.mxu0 0
    %105 = vmatprep.subr.bf16.mxu0 0
    %106 = vmatpush1.bf16.msra.mxu0 0
    %107 = vmatprep.subr.bf16.mxu0 0
    %108 = vmatpush1.bf16.msra.mxu0 0
    %109 = vmatprep.subr.bf16.mxu0 0
    %110 = vmatpush1.bf16.msra.mxu0 0
    %111 = vmatprep.subr.bf16.mxu0 0
    %112 = vmatpush1.bf16.msra.mxu0 0
    %113 = vmatprep.subr.bf16.mxu0 0
    %114 = vmatpush1.bf16.msra.mxu0 0
    %115 = vmatprep.subr.bf16.mxu0 0
    %116 = vmatpush1.bf16.msra.mxu0 0
    %117 = vmatprep.subr.bf16.mxu0 0
    %118 = vmatpush1.bf16.msra.mxu0 0
    %119 = vmatprep.mubr.bf16.mxu0 0
    %120 = vmatmul.mubr.bf16.gmra.mrb[0].mxu0 %v81
    %v121 = vpop.f32.mrb[0].mxu0
    %v122 = vadd.f32 %v78, %v121
    %v123 = vpop.f32.mrb[0].mxu0
    %v124 = vpop.f32.mrb[0].mxu0
    %v125 = vpop.f32.mrb[0].mxu0
    %126 = vdwg.mxu0
    %v127 = vmax.f32 %v122, 0.0
    %v128 = vpack.c.bf16 %v127, %v127
    %v129 = vlaneseq
    %v130 = vshrl.u32 %v129, 7
    %v131 = vsub.s32 1, %v130
    %v132 = vrot.slane %v74, %v131
    %v149 = vunpack.c.l.b16 %v41
    %v150 = vunpack.c.l.b16 %v42
    %v151 = vunpack.c.l.b16 %v43
    %v152 = vunpack.c.l.b16 %v44
    %v153 = vunpack.c.l.b16 %v45
    %v154 = vunpack.c.l.b16 %v46
    %v155 = vunpack.c.l.b16 %v47
    %v156 = vunpack.c.l.b16 %v48
    %v157 = vunpack.c.l.b16 %v49
    %v158 = vunpack.c.l.b16 %v50
    %v159 = vunpack.c.l.b16 %v51
    %v160 = vunpack.c.l.b16 %v52
    %v161 = vunpack.c.l.b16 %v53
    %v162 = vunpack.c.l.b16 %v54
    %v163 = vunpack.c.l.b16 %v55
    %v164 = vunpack.c.l.b16 %v56
    %v165 = vpack.c.b16 %v150, %v149
    %v166 = vpack.c.b16 %v152, %v151
    %v167 = vpack.c.b16 %v154, %v153
    %v168 = vpack.c.b16 %v156, %v155
    %v169 = vpack.c.b16 %v158, %v157
    %v170 = vpack.c.b16 %v160, %v159
    %v171 = vpack.c.b16 %v162, %v161
    %v172 = vpack.c.b16 %v164, %v163
    %181 = vmatprep.subr.bf16.mxu0 0
    %182 = vmatpush1.bf16.msra.mxu0 %v165
    %183 = vmatprep.subr.bf16.mxu0 0
    %184 = vmatpush1.bf16.msra.mxu0 %v166
    %185 = vmatprep.subr.bf16.mxu0 0
    %186 = vmatpush1.bf16.msra.mxu0 %v167
    %187 = vmatprep.subr.bf16.mxu0 0
    %188 = vmatpush1.bf16.msra.mxu0 %v168
    %189 = vmatprep.subr.bf16.mxu0 0
    %190 = vmatpush1.bf16.msra.mxu0 %v169
    %191 = vmatprep.subr.bf16.mxu0 0
    %192 = vmatpush1.bf16.msra.mxu0 %v170
    %193 = vmatprep.subr.bf16.mxu0 0
    %194 = vmatpush1.bf16.msra.mxu0 %v171
    %195 = vmatprep.subr.bf16.mxu0 0
    %196 = vmatpush1.bf16.msra.mxu0 %v172
    %197 = vmatprep.subr.bf16.mxu0 0
    %198 = vmatpush1.bf16.msra.mxu0 0
    %199 = vmatprep.subr.bf16.mxu0 0
    %200 = vmatpush1.bf16.msra.mxu0 0
    %201 = vmatprep.subr.bf16.mxu0 0
    %202 = vmatpush1.bf16.msra.mxu0 0
    %203 = vmatprep.subr.bf16.mxu0 0
    %204 = vmatpush1.bf16.msra.mxu0 0
    %205 = vmatprep.subr.bf16.mxu0 0
    %206 = vmatpush1.bf16.msra.mxu0 0
    %207 = vmatprep.subr.bf16.mxu0 0
    %208 = vmatpush1.bf16.msra.mxu0 0
    %209 = vmatprep.subr.bf16.mxu0 0
    %210 = vmatpush1.bf16.msra.mxu0 0
    %211 = vmatprep.subr.bf16.mxu0 0
    %212 = vmatpush1.bf16.msra.mxu0 0
    %213 = vmatprep.mubr.bf16.mxu0 0
    %214 = vmatmul.mubr.bf16.gmra.mrb[0].mxu0 %v128
    %v215 = vpop.f32.mrb[0].mxu0
    %v216 = vadd.f32 %v132, %v215
    %v217 = vpop.f32.mrb[0].mxu0
    %v218 = vpop.f32.mrb[0].mxu0
    %v219 = vpop.f32.mrb[0].mxu0
    %220 = vdwg.mxu0
    %v221 = vmax.f32 %v216, 0.0
    %v222 = vpack.c.bf16 %v221, %v221
    %v223 = vlaneseq
    %v224 = vshrl.u32 %v223, 7
    %v225 = vsub.s32 2, %v224
    %v226 = vrot.slane %v74, %v225
    %v243 = vunpack.c.l.b16 %v57
    %v244 = vunpack.c.l.b16 %v58
    %v245 = vunpack.c.l.b16 %v59
    %v246 = vunpack.c.l.b16 %v60
    %v247 = vunpack.c.l.b16 %v61
    %v248 = vunpack.c.l.b16 %v62
    %v249 = vunpack.c.l.b16 %v63
    %v250 = vunpack.c.l.b16 %v64
    %v251 = vunpack.c.l.b16 %v65
    %v252 = vunpack.c.l.b16 %v66
    %v253 = vunpack.c.l.b16 %v67
    %v254 = vunpack.c.l.b16 %v68
    %v255 = vunpack.c.l.b16 %v69
    %v256 = vunpack.c.l.b16 %v70
    %v257 = vunpack.c.l.b16 %v71
    %v258 = vunpack.c.l.b16 %v72
    %v259 = vpack.c.b16 %v244, %v243
    %v260 = vpack.c.b16 %v246, %v245
    %v261 = vpack.c.b16 %v248, %v247
    %v262 = vpack.c.b16 %v250, %v249
    %v263 = vpack.c.b16 %v252, %v251
    %v264 = vpack.c.b16 %v254, %v253
    %v265 = vpack.c.b16 %v256, %v255
    %v266 = vpack.c.b16 %v258, %v257
    %275 = vmatprep.subr.bf16.mxu0 0
    %276 = vmatpush1.bf16.msra.mxu0 %v259
    %277 = vmatprep.subr.bf16.mxu0 0
    %278 = vmatpush1.bf16.msra.mxu0 %v260
    %279 = vmatprep.subr.bf16.mxu0 0
    %280 = vmatpush1.bf16.msra.mxu0 %v261
    %281 = vmatprep.subr.bf16.mxu0 0
    %282 = vmatpush1.bf16.msra.mxu0 %v262
    %283 = vmatprep.subr.bf16.mxu0 0
    %284 = vmatpush1.bf16.msra.mxu0 %v263
    %285 = vmatprep.subr.bf16.mxu0 0
    %286 = vmatpush1.bf16.msra.mxu0 %v264
    %287 = vmatprep.subr.bf16.mxu0 0
    %288 = vmatpush1.bf16.msra.mxu0 %v265
    %289 = vmatprep.subr.bf16.mxu0 0
    %290 = vmatpush1.bf16.msra.mxu0 %v266
    %291 = vmatprep.subr.bf16.mxu0 0
    %292 = vmatpush1.bf16.msra.mxu0 0
    %293 = vmatprep.subr.bf16.mxu0 0
    %294 = vmatpush1.bf16.msra.mxu0 0
    %295 = vmatprep.subr.bf16.mxu0 0
    %296 = vmatpush1.bf16.msra.mxu0 0
    %297 = vmatprep.subr.bf16.mxu0 0
    %298 = vmatpush1.bf16.msra.mxu0 0
    %299 = vmatprep.subr.bf16.mxu0 0
    %300 = vmatpush1.bf16.msra.mxu0 0
    %301 = vmatprep.subr.bf16.mxu0 0
    %302 = vmatpush1.bf16.msra.mxu0 0
    %303 = vmatprep.subr.bf16.mxu0 0
    %304 = vmatpush1.bf16.msra.mxu0 0
    %305 = vmatprep.subr.bf16.mxu0 0
    %306 = vmatpush1.bf16.msra.mxu0 0
    %307 = vmatprep.mubr.bf16.mxu0 0
    %308 = vmatmul.mubr.bf16.gmra.mrb[0].mxu0 %v222
    %v309 = vpop.f32.mrb[0].mxu0
    %v310 = vadd.f32 %v226, %v309
    %v311 = vpop.f32.mrb[0].mxu0
    %v312 = vpop.f32.mrb[0].mxu0
    %v313 = vpop.f32.mrb[0].mxu0
    %314 = vdwg.mxu0
    %vm315 = vcmask 31744
    %316 = vst.msk [vmem:[%s2] sm:$0xff] %vm315, %v310
    // Predicated region
    $region18: #{tpu_custom_call.1} parent=1 // pred_check
      _
    $region19: #{tpu_custom_call.1} parent=1 // pred_check_branch
      %318 = sbr.rel (0) target = $region21
    $region20: #{tpu_custom_call.1} parent=1 // pred_region
      _
    $region21: #{tpu_custom_call.1} parent=1 // pred_fallthru
      _
    // Predicated region
    $region22: #{tpu_custom_call.1} parent=1 // pred_check
      _
    $region23: #{tpu_custom_call.1} parent=1 // pred_check_branch
      %320 = sbr.rel (0) target = $region25
    $region24: #{tpu_custom_call.1} parent=1 // pred_region
      _
    $region25: #{tpu_custom_call.1} parent=1 // pred_fallthru
      _
    %321 = vsyncpa [#allocation3], 1
    %322 = vsyncpa [#allocation5], 1

</llo_original>
